<compile_context>
chip_gen: v7x
topology: tpu7x:2x2x1
jax: 0.10.0
libtpu: 0.0.40
codegen_flags: <defaults>
</compile_context>

<pallas_src>
import functools
import math

import jax
import jax.numpy as jnp
import numpy as np
from jax.experimental import pallas as pl
from jax.experimental.pallas import tpu as pltpu


def _round_up(a, b):
    return ((a + b - 1) // b) * b


def _pack_weights(w0, b0, w1, b1, w_pos, w_neg):
    """Repack per-head weights into 3 wide (transposed-compute) matrices."""
    K, d, m1 = w0.shape
    # Layer 0:  hT = W0T @ xT,  W0T[k*m1 + m, j] = w0[k, j, m]     -> [K*m1, d]
    w0T = jnp.transpose(w0, (0, 2, 1)).reshape(K * m1, d)
    b0c = b0.reshape(K * m1, 1)
    # Layer 1:  oT = W1T @ hT,  block-diagonal of w1[k].T          -> [K*d, K*m1]
    w1T = jax.scipy.linalg.block_diag(*[jnp.transpose(w1[k]) for k in range(K)])
    b1c = b1.reshape(K * d, 1)
    # Final:    yT = W_eff @ oT, W_eff = fc1_pos - fc1_neg         -> [d, K*d]
    wf = (w_pos - w_neg).astype(jnp.float32)
    return (w0T.astype(jnp.float32), b0c.astype(jnp.float32),
            w1T.astype(jnp.float32), b1c.astype(jnp.float32), wf)


def _choose_tiling(n, block_n):
    n128 = _round_up(n, 128)
    bn = min(_round_up(block_n, 128), n128)
    # Keep >= 2 grid steps when the batch allows it so both v7x TensorCores
    # get work under dimension_semantics=("parallel",); no effect on v5e/v6e.
    if pl.cdiv(n, bn) < 2 and n128 >= 256:
        bn = _round_up(pl.cdiv(n128, 2), 128)
    grid_n = pl.cdiv(n, bn)
    return bn, grid_n


def _make_kernel(bn, n_valid, masked):
    n_groups = bn // 128

    def kernel(x_ref, w0T_ref, b0_ref, w1T_ref, b1_ref, wf_ref, y_ref, l2p_ref):
        x = x_ref[...]                            # (bn, d) row-major batch tile
        # Layer 0 (all K heads fused).  NT matmul contracting the shared
        # feature axis of W0T [K*m1, d] and x [bn, d] -> hT [K*m1, bn]:
        # puts the batch on the 128-lane axis without materializing x^T.
        h = jax.lax.dot_general(
            w0T_ref[...], x, (((1,), (1,)), ((), ())),
            preferred_element_type=jnp.float32)
        h = jax.nn.sigmoid(h + b0_ref[...])       # (K*m1, bn), lane-dense
        # Layer 1: block-diagonal weight -> all K heads at once.
        o = jnp.dot(w1T_ref[...], h, preferred_element_type=jnp.float32)
        o = jax.nn.sigmoid(o + b1_ref[...])       # (K*d, bn)
        # Final linear (fc1_pos - fc1_neg).
        yT = jnp.dot(wf_ref[...], o, preferred_element_type=jnp.float32)  # (d, bn)
        # Store in the module's row-major [N, d] layout (on-chip transpose;
        # the kernel is memory-bound so the XLU work is hidden).
        y_ref[...] = yT.T.astype(y_ref.dtype)
        # l2 partial sums: lane-group accumulation (pure VPU adds; no full
        # cross-lane reduce / broadcast write).  Out-of-bounds rows of a
        # ragged last tile are masked out.
        sq = yT * yT                              # (d, bn)
        if masked:
            col = pl.program_id(0) * bn + jax.lax.broadcasted_iota(
                jnp.int32, (1, bn), 1)
            sq = jnp.where(col < n_valid, sq, 0.0)
        acc = sq[:, 0:128]
        for g in range(1, n_groups):
            acc = acc + sq[:, g * 128:(g + 1) * 128]
        l2p_ref[...] = acc[None]

    return kernel


@functools.partial(jax.jit, static_argnames=("block_n",))
def scalable_dag_forward(x, w0, b0, w1, b1, w_pos, w_neg, *, block_n=8192):
    """Fused forward.  Returns (y [N, D], l2_reg scalar)."""
    n, d = x.shape
    K, d_in, m1 = w0.shape
    assert d_in == d and w1.shape == (K, m1, d)
    assert w_pos.shape == (d, K * d) and w_neg.shape == (d, K * d)

    bn, grid_n = _choose_tiling(n, block_n)
    masked = (n % bn) != 0

    w0T, b0c, w1T, b1c, wf = _pack_weights(w0, b0, w1, b1, w_pos, w_neg)
    x = x.astype(jnp.float32)

    kernel = _make_kernel(bn, n, masked)

    y, l2p = pl.pallas_call(
        kernel,
        out_shape=(
            jax.ShapeDtypeStruct((n, d), jnp.float32),
            jax.ShapeDtypeStruct((grid_n, d, 128), jnp.float32),
        ),
        grid_spec=pltpu.PrefetchScalarGridSpec(
            num_scalar_prefetch=0,
            grid=(grid_n,),
            in_specs=[
                pl.BlockSpec((bn, d), lambda i: (i, 0)),          # x tile
                pl.BlockSpec((K * m1, d), lambda i: (0, 0)),      # W0T (resident)
                pl.BlockSpec((K * m1, 1), lambda i: (0, 0)),      # b0
                pl.BlockSpec((K * d, K * m1), lambda i: (0, 0)),  # W1T (blkdiag)
                pl.BlockSpec((K * d, 1), lambda i: (0, 0)),       # b1
                pl.BlockSpec((d, K * d), lambda i: (0, 0)),       # fc1_pos-fc1_neg
            ],
            out_specs=[
                pl.BlockSpec((bn, d), lambda i: (i, 0)),          # y tile
                pl.BlockSpec((1, d, 128), lambda i: (i, 0, 0)),   # l2 partials
            ],
        ),
        compiler_params=pltpu.CompilerParams(
            dimension_semantics=("parallel",),
            vmem_limit_bytes=48 * 1024 * 1024,
        ),
    )(x, w0T, b0c, w1T, b1c, wf)

    l2 = jnp.sum(l2p) / jnp.float32(n)
    return y, l2


def reference_forward(x, w0, b0, w1, b1, w_pos, w_neg):
    """Pure-JAX reference mirroring the PyTorch module."""
    n, d = x.shape
    K = w0.shape[0]
    xk = jnp.broadcast_to(x[:, None, :], (n, K, d))                  # [n, K, d]
    h = jax.nn.sigmoid(jnp.einsum('nkd,kdm->nkm', xk, w0) + b0[None])
    o = jax.nn.sigmoid(jnp.einsum('nkm,kmd->nkd', h, w1) + b1[None])
    phi = o.reshape(n, K * d)                                        # view(-1, K*d)
    y = phi @ (w_pos - w_neg).T
    l2 = jnp.sum(y ** 2) / n
    return y, l2


if __name__ == "__main__":
    # Small shapes consistent with the module: dims = [d, m1, d].
    D, K, M1 = 8, 4, 16

    key = jax.random.PRNGKey(0)
    kx1, kx2, k0w, k0b, k1w, k1b, kp, kn = jax.random.split(key, 8)

    # LocallyConnected init (kaiming-uniform style bounds, deterministic).
    b0_bound = 1.0 / math.sqrt(D)
    w0 = jax.random.uniform(k0w, (K, D, M1), jnp.float32, -b0_bound, b0_bound)
    b0 = jax.random.uniform(k0b, (K, M1), jnp.float32, -b0_bound, b0_bound)
    b1_bound = 1.0 / math.sqrt(M1)
    w1 = jax.random.uniform(k1w, (K, M1, D), jnp.float32, -b1_bound, b1_bound)
    b1 = jax.random.uniform(k1b, (K, D), jnp.float32, -b1_bound, b1_bound)

    # fc1_pos / fc1_neg are zero-initialized in the module; use small
    # deterministic nonnegative values here so the test is nontrivial.
    w_pos = jax.random.uniform(kp, (D, K * D), jnp.float32, 0.0, 0.1)
    w_neg = jax.random.uniform(kn, (D, K * D), jnp.float32, 0.0, 0.1)

    # Two cases: evenly tiled batch, and a ragged batch exercising the
    # cdiv grid + in-kernel l2 masking path.
    for n, kx in ((512, kx1), (500, kx2)):
        x = jax.random.normal(kx, (n, D), dtype=jnp.float32)

        y, l2 = scalable_dag_forward(x, w0, b0, w1, b1, w_pos, w_neg)
        y = jax.block_until_ready(y)
        l2 = jax.block_until_ready(l2)

        y_ref, l2_ref = reference_forward(x, w0, b0, w1, b1, w_pos, w_neg)
        np.testing.assert_allclose(np.asarray(y), np.asarray(y_ref),
                                   rtol=1e-4, atol=1e-4)
        np.testing.assert_allclose(np.asarray(l2), np.asarray(l2_ref),
                                   rtol=1e-4, atol=1e-4)

    # TODO(synk): h_func()'s trace_expm (matrix exponential), fc1_l1_reg and
    # fc1_to_adj are not part of forward() and are left out of the kernel.
    print("KERNEL_OK")
</pallas_src>

<mosaic_0001>
module attributes {stable_mosaic.version = 11 : i64} {
  func.func @kernel(%arg0: i32, %arg1: memref<256x8xf32, #tpu.memory_space<vmem>>, %arg2: memref<64x8xf32, #tpu.memory_space<vmem>>, %arg3: memref<64x1xf32, #tpu.memory_space<vmem>>, %arg4: memref<32x64xf32, #tpu.memory_space<vmem>>, %arg5: memref<32x1xf32, #tpu.memory_space<vmem>>, %arg6: memref<8x32xf32, #tpu.memory_space<vmem>>, %arg7: memref<256x8xf32, #tpu.memory_space<vmem>>, %arg8: memref<1x8x128xf32, #tpu.memory_space<vmem>>) attributes {dimension_semantics = [#tpu.dimension_semantics<parallel>], iteration_bounds = array<i64: 2>, scalar_prefetch = 0 : i64, scratch_operands = 0 : i64, tpu.core_type = #tpu.core_type<tc>, window_params = [{transform_indices = @transform_0, window_bounds = array<i64: 256, 8>}, {pipeline_mode = #tpu.pipeline_mode<synchronous>, transform_indices = @transform_1, window_bounds = array<i64: 64, 8>}, {pipeline_mode = #tpu.pipeline_mode<synchronous>, transform_indices = @transform_2, window_bounds = array<i64: 64, 1>}, {pipeline_mode = #tpu.pipeline_mode<synchronous>, transform_indices = @transform_3, window_bounds = array<i64: 32, 64>}, {pipeline_mode = #tpu.pipeline_mode<synchronous>, transform_indices = @transform_4, window_bounds = array<i64: 32, 1>}, {pipeline_mode = #tpu.pipeline_mode<synchronous>, transform_indices = @transform_5, window_bounds = array<i64: 8, 32>}, {transform_indices = @transform_6, window_bounds = array<i64: 256, 8>}, {transform_indices = @transform_7, window_bounds = array<i64: 1, 8, 128>}]} {
    %c0 = arith.constant 0 : index
    %c0_0 = arith.constant 0 : index
    %0 = vector.load %arg1[%c0, %c0_0] : memref<256x8xf32, #tpu.memory_space<vmem>>, vector<256x8xf32>
    %c0_1 = arith.constant 0 : index
    %c0_2 = arith.constant 0 : index
    %1 = vector.load %arg2[%c0_1, %c0_2] : memref<64x8xf32, #tpu.memory_space<vmem>>, vector<64x8xf32>
    %cst = arith.constant dense<0.000000e+00> : vector<64x256xf32>
    %2 = tpu.matmul %1, %0, %cst {dimension_numbers = #tpu.dot_dimension_numbers<[1], [1], [0], [0], [0, 0, 1, 0], [], []>} : vector<64x8xf32>, vector<256x8xf32>, vector<64x256xf32> -> vector<64x256xf32>
    %c0_3 = arith.constant 0 : index
    %c0_4 = arith.constant 0 : index
    %3 = vector.load %arg3[%c0_3, %c0_4] : memref<64x1xf32, #tpu.memory_space<vmem>>, vector<64x1xf32>
    %4 = vector.broadcast %3 : vector<64x1xf32> to vector<64x256xf32>
    %5 = arith.addf %2, %4 : vector<64x256xf32>
    %6 = arith.negf %5 : vector<64x256xf32>
    %7 = math.exp %6 : vector<64x256xf32>
    %cst_5 = arith.constant 1.000000e+00 : f32
    %8 = vector.broadcast %cst_5 : f32 to vector<64x256xf32>
    %9 = arith.addf %8, %7 : vector<64x256xf32>
    %10 = arith.divf %8, %9 : vector<64x256xf32>
    %c0_6 = arith.constant 0 : index
    %c0_7 = arith.constant 0 : index
    %11 = vector.load %arg4[%c0_6, %c0_7] : memref<32x64xf32, #tpu.memory_space<vmem>>, vector<32x64xf32>
    %cst_8 = arith.constant dense<0.000000e+00> : vector<32x256xf32>
    %12 = tpu.matmul %11, %10, %cst_8 {dimension_numbers = #tpu.dot_dimension_numbers<[1], [0], [0], [1], [0, 0, 1, 1], [], []>} : vector<32x64xf32>, vector<64x256xf32>, vector<32x256xf32> -> vector<32x256xf32>
    %c0_9 = arith.constant 0 : index
    %c0_10 = arith.constant 0 : index
    %13 = vector.load %arg5[%c0_9, %c0_10] : memref<32x1xf32, #tpu.memory_space<vmem>>, vector<32x1xf32>
    %14 = vector.broadcast %13 : vector<32x1xf32> to vector<32x256xf32>
    %15 = arith.addf %12, %14 : vector<32x256xf32>
    %16 = arith.negf %15 : vector<32x256xf32>
    %17 = math.exp %16 : vector<32x256xf32>
    %cst_11 = arith.constant 1.000000e+00 : f32
    %18 = vector.broadcast %cst_11 : f32 to vector<32x256xf32>
    %19 = arith.addf %18, %17 : vector<32x256xf32>
    %20 = arith.divf %18, %19 : vector<32x256xf32>
    %c0_12 = arith.constant 0 : index
    %c0_13 = arith.constant 0 : index
    %21 = vector.load %arg6[%c0_12, %c0_13] : memref<8x32xf32, #tpu.memory_space<vmem>>, vector<8x32xf32>
    %cst_14 = arith.constant dense<0.000000e+00> : vector<8x256xf32>
    %22 = tpu.matmul %21, %20, %cst_14 {dimension_numbers = #tpu.dot_dimension_numbers<[1], [0], [0], [1], [0, 0, 1, 1], [], []>} : vector<8x32xf32>, vector<32x256xf32>, vector<8x256xf32> -> vector<8x256xf32>
    %23 = tpu.transpose %22, [1, 0] : vector<8x256xf32> -> vector<256x8xf32>
    %c0_15 = arith.constant 0 : index
    %c0_16 = arith.constant 0 : index
    %24 = vector.load %arg7[%c0_15, %c0_16] : memref<256x8xf32, #tpu.memory_space<vmem>>, vector<256x8xf32>
    tpu.vector_store %arg7[%c0_15, %c0_16], %23 {strides = array<i32>} : memref<256x8xf32, #tpu.memory_space<vmem>>, vector<256x8xf32>,
    %25 = arith.mulf %22, %22 : vector<8x256xf32>
    %26 = vector.extract_strided_slice %25 {offsets = [0, 0], sizes = [8, 128], strides = [1, 1]} : vector<8x256xf32> to vector<8x128xf32>
    %27 = vector.extract_strided_slice %25 {offsets = [0, 128], sizes = [8, 128], strides = [1, 1]} : vector<8x256xf32> to vector<8x128xf32>
    %28 = arith.addf %26, %27 : vector<8x128xf32>
    %29 = vector.shape_cast %28 : vector<8x128xf32> to vector<1x8x128xf32>
    %c0_17 = arith.constant 0 : index
    %c0_18 = arith.constant 0 : index
    %c0_19 = arith.constant 0 : index
    %30 = vector.load %arg8[%c0_17, %c0_18, %c0_19] : memref<1x8x128xf32, #tpu.memory_space<vmem>>, vector<1x8x128xf32>
    tpu.vector_store %arg8[%c0_17, %c0_18, %c0_19], %29 {strides = array<i32>} : memref<1x8x128xf32, #tpu.memory_space<vmem>>, vector<1x8x128xf32>,
    return
  }
  func.func @transform_0(%arg0: i32) -> (i32, i32) {
    %c0_i32 = arith.constant 0 : i32
    %c0_i32_0 = arith.constant 0 : i32
    return %arg0, %c0_i32 : i32, i32
  }
  func.func @transform_1(%arg0: i32) -> (i32, i32) {
    %c0_i32 = arith.constant 0 : i32
    %c0_i32_0 = arith.constant 0 : i32
    %c0_i32_1 = arith.constant 0 : i32
    return %c0_i32, %c0_i32_0 : i32, i32
  }
  func.func @transform_2(%arg0: i32) -> (i32, i32) {
    %c0_i32 = arith.constant 0 : i32
    %c0_i32_0 = arith.constant 0 : i32
    %c0_i32_1 = arith.constant 0 : i32
    return %c0_i32, %c0_i32_0 : i32, i32
  }
  func.func @transform_3(%arg0: i32) -> (i32, i32) {
    %c0_i32 = arith.constant 0 : i32
    %c0_i32_0 = arith.constant 0 : i32
    %c0_i32_1 = arith.constant 0 : i32
    return %c0_i32, %c0_i32_0 : i32, i32
  }
  func.func @transform_4(%arg0: i32) -> (i32, i32) {
    %c0_i32 = arith.constant 0 : i32
    %c0_i32_0 = arith.constant 0 : i32
    %c0_i32_1 = arith.constant 0 : i32
    return %c0_i32, %c0_i32_0 : i32, i32
  }
  func.func @transform_5(%arg0: i32) -> (i32, i32) {
    %c0_i32 = arith.constant 0 : i32
    %c0_i32_0 = arith.constant 0 : i32
    %c0_i32_1 = arith.constant 0 : i32
    return %c0_i32, %c0_i32_0 : i32, i32
  }
  func.func @transform_6(%arg0: i32) -> (i32, i32) {
    %c0_i32 = arith.constant 0 : i32
    %c0_i32_0 = arith.constant 0 : i32
    return %arg0, %c0_i32 : i32, i32
  }
  func.func @transform_7(%arg0: i32) -> (i32, i32, i32) {
    %c0_i32 = arith.constant 0 : i32
    %c0_i32_0 = arith.constant 0 : i32
    %c0_i32_1 = arith.constant 0 : i32
    return %arg0, %c0_i32, %c0_i32_0 : i32, i32, i32
  }
}

</mosaic_0001>

<llo_original>
// kernel: sub.1
$region0: #{sub.1}
  #allocation0 [shape = 's32[1]{0}', space=sflag, size = 0x4, scoped, tag = 'scoped memory for sub.1']
  %s0 = inlined_call_operand.vmem [shape: f32[8,32], index: 0, kind: input, shape index: {}]
  %s1 = inlined_call_operand.vmem [shape: f32[8,32], index: 1, kind: input, shape index: {}]
  %s2 = inlined_call_operand.vmem [shape: f32[8,32], index: 2, kind: output, shape index: {}]
  %v3 = vld [vmem:[%s0] sm:$0xff]
  %v4 = vld [vmem:[%s1] sm:$0xff]
  %5 = xla_tuple %v3, %v4
  %6 = xla_tuple %5
  %v7 = vsub.f32 %v3, %v4
  %8 = xla_tuple %v7
  %9 = vst [vmem:[%s2] sm:$0xff] %v7

// kernel: scalable_dag_forward.1
$region0: #{scalable_dag_forward.1}
  #allocation0 [shape = 'u32[]', space=smem, size = 0x4, offset = 0x4, fixed_abs, tag = 'smem constant byte address 0x4 - core index']
  #allocation1 [shape = 'u32[144,128]{1,0:T(1,128)}', space=vmem, size = 0x12000, scoped, tag = 'internal scratch']
  %s0 = inlined_call_operand.vmem [shape: f32[512,8], index: 0, kind: input, shape index: {}]
  %s1 = inlined_call_operand.vmem [shape: f32[64,8], index: 1, kind: input, shape index: {}]
  %s2 = inlined_call_operand.vmem [shape: f32[64,1], index: 2, kind: input, shape index: {}]
  %s3 = inlined_call_operand.vmem [shape: f32[32,64], index: 3, kind: input, shape index: {}]
  %s4 = inlined_call_operand.vmem [shape: f32[32,1], index: 4, kind: input, shape index: {}]
  %s5 = inlined_call_operand.vmem [shape: f32[8,32], index: 5, kind: input, shape index: {}]
  %s6 = inlined_call_operand.vmem [shape: f32[512,8], index: 6, kind: output, shape index: {0}]
  %s7 = inlined_call_operand.vmem [shape: f32[2,8,128], index: 7, kind: output, shape index: {1}]
  %8 = xla_tuple %s6, %s7
  %s9 = sld [smem:[#allocation0]]
  $region65: #{scalable_dag_forward.1} parent=0
    _
  %s11 = ssub.s32 1, %s9
  %s12 = scalar_select 0, %s11, %s9
  loop: start=0, step=1, limit=4
  $region2: #{scalable_dag_forward.1} parent=0 // loop_pre_header
    _
  $region3: #{scalable_dag_forward.1} parent=0 // loop_header
    %s14 = sphi 0, %s18
    %p15 = scmp.ge.s32.totalorder %s14, 4
    %s24 = sphi 0, %s26
    %s27 = sphi 0, %s24
    %s28 = sphi 0, %s27
    %s44 = sphi 0, %s28
    %s48 = sphi 0, %s48
    %s50 = sphi 0, %s48
    %s51 = sphi 0, %s50
    %s65 = sphi 0, %s51
    %s69 = sphi 0, %s69
    %s71 = sphi 0, %s69
    %s72 = sphi 0, %s71
    %s86 = sphi 0, %s72
    %s90 = sphi 0, %s90
    %s92 = sphi 0, %s90
    %s93 = sphi 0, %s92
    %s107 = sphi 0, %s93
    %s111 = sphi 0, %s111
    %s113 = sphi 0, %s111
    %s114 = sphi 0, %s113
    %s128 = sphi 0, %s114
    %s132 = sphi 0, %s132
    %s134 = sphi 0, %s132
    %s135 = sphi 0, %s134
    %s149 = sphi 0, %s135
    %s155 = sphi 0, %s157
    %s158 = sphi 0, %s155
    %s159 = sphi 0, %s158
    %s175 = sphi 0, %s159
    %s181 = sphi 0, %s183
    %s184 = sphi 0, %s181
    %s185 = sphi 0, %s184
    %s201 = sphi 0, %s185
  $region4: #{scalable_dag_forward.1} parent=0 // loop_header_branch
    %17 = sbr.rel (%p15) target = $region8
  $region5: #{scalable_dag_forward.1} parent=0 // loop_body
    %s19 = ssub.s32 %s14, 1
    %s20 = ssub.s32 %s14, 2
    %s21 = sadd.s32 %s14, 1
    %s22 = ssub.s32 %s14, %s21
    %p23 = scmp.eq.s32.totalorder %s22, 0
    %s25 = sadd.s32 %s24, 1
    %s26 = scalar_select %p23, %s24, %s25
    %p29 = pneg %p23
    %p30 = scmp.eq.s32.totalorder %s14, 1
    %p31 = por %p29, %p30
    %p32 = scmp.ne.s32.totalorder %s24, %s27
    %p33 = scmp.eq.s32.totalorder %s14, 0
    %p34 = por %p32, %p33
    %p35 = scmp.ne.s32.totalorder %s24, %s27
    %p36 = scmp.eq.s32.totalorder %s19, 1
    %p37 = por %p35, %p36
    %p38 = scmp.ne.s32.totalorder %s27, %s28
    %p39 = scmp.eq.s32.totalorder %s19, 0
    %p40 = por %p38, %p39
    %p41 = scmp.ne.s32.totalorder %s27, %s28
    %p42 = scmp.eq.s32.totalorder %s20, 1
    %p43 = por %p41, %p42
    %p45 = scmp.ne.s32.totalorder %s28, %s44
    %p46 = scmp.eq.s32.totalorder %s20, 0
    %p47 = por %p45, %p46
    %s49 = sadd.s32 %s48, 1
    %p52 = scmp.eq.s32.totalorder %s14, 1
    %p53 = scmp.ne.s32.totalorder %s48, %s50
    %p54 = scmp.eq.s32.totalorder %s14, 0
    %p55 = por %p53, %p54
    %p56 = scmp.ne.s32.totalorder %s48, %s50
    %p57 = scmp.eq.s32.totalorder %s19, 1
    %p58 = por %p56, %p57
    %p59 = scmp.ne.s32.totalorder %s50, %s51
    %p60 = scmp.eq.s32.totalorder %s19, 0
    %p61 = por %p59, %p60
    %p62 = scmp.ne.s32.totalorder %s50, %s51
    %p63 = scmp.eq.s32.totalorder %s20, 1
    %p64 = por %p62, %p63
    %p66 = scmp.ne.s32.totalorder %s51, %s65
    %p67 = scmp.eq.s32.totalorder %s20, 0
    %p68 = por %p66, %p67
    %s70 = sadd.s32 %s69, 1
    %p73 = scmp.eq.s32.totalorder %s14, 1
    %p74 = scmp.ne.s32.totalorder %s69, %s71
    %p75 = scmp.eq.s32.totalorder %s14, 0
    %p76 = por %p74, %p75
    %p77 = scmp.ne.s32.totalorder %s69, %s71
    %p78 = scmp.eq.s32.totalorder %s19, 1
    %p79 = por %p77, %p78
    %p80 = scmp.ne.s32.totalorder %s71, %s72
    %p81 = scmp.eq.s32.totalorder %s19, 0
    %p82 = por %p80, %p81
    %p83 = scmp.ne.s32.totalorder %s71, %s72
    %p84 = scmp.eq.s32.totalorder %s20, 1
    %p85 = por %p83, %p84
    %p87 = scmp.ne.s32.totalorder %s72, %s86
    %p88 = scmp.eq.s32.totalorder %s20, 0
    %p89 = por %p87, %p88
    %s91 = sadd.s32 %s90, 1
    %p94 = scmp.eq.s32.totalorder %s14, 1
    %p95 = scmp.ne.s32.totalorder %s90, %s92
    %p96 = scmp.eq.s32.totalorder %s14, 0
    %p97 = por %p95, %p96
    %p98 = scmp.ne.s32.totalorder %s90, %s92
    %p99 = scmp.eq.s32.totalorder %s19, 1
    %p100 = por %p98, %p99
    %p101 = scmp.ne.s32.totalorder %s92, %s93
    %p102 = scmp.eq.s32.totalorder %s19, 0
    %p103 = por %p101, %p102
    %p104 = scmp.ne.s32.totalorder %s92, %s93
    %p105 = scmp.eq.s32.totalorder %s20, 1
    %p106 = por %p104, %p105
    %p108 = scmp.ne.s32.totalorder %s93, %s107
    %p109 = scmp.eq.s32.totalorder %s20, 0
    %p110 = por %p108, %p109
    %s112 = sadd.s32 %s111, 1
    %p115 = scmp.eq.s32.totalorder %s14, 1
    %p116 = scmp.ne.s32.totalorder %s111, %s113
    %p117 = scmp.eq.s32.totalorder %s14, 0
    %p118 = por %p116, %p117
    %p119 = scmp.ne.s32.totalorder %s111, %s113
    %p120 = scmp.eq.s32.totalorder %s19, 1
    %p121 = por %p119, %p120
    %p122 = scmp.ne.s32.totalorder %s113, %s114
    %p123 = scmp.eq.s32.totalorder %s19, 0
    %p124 = por %p122, %p123
    %p125 = scmp.ne.s32.totalorder %s113, %s114
    %p126 = scmp.eq.s32.totalorder %s20, 1
    %p127 = por %p125, %p126
    %p129 = scmp.ne.s32.totalorder %s114, %s128
    %p130 = scmp.eq.s32.totalorder %s20, 0
    %p131 = por %p129, %p130
    %s133 = sadd.s32 %s132, 1
    %p136 = scmp.eq.s32.totalorder %s14, 1
    %p137 = scmp.ne.s32.totalorder %s132, %s134
    %p138 = scmp.eq.s32.totalorder %s14, 0
    %p139 = por %p137, %p138
    %p140 = scmp.ne.s32.totalorder %s132, %s134
    %p141 = scmp.eq.s32.totalorder %s19, 1
    %p142 = por %p140, %p141
    %p143 = scmp.ne.s32.totalorder %s134, %s135
    %p144 = scmp.eq.s32.totalorder %s19, 0
    %p145 = por %p143, %p144
    %p146 = scmp.ne.s32.totalorder %s134, %s135
    %p147 = scmp.eq.s32.totalorder %s20, 1
    %p148 = por %p146, %p147
    %p150 = scmp.ne.s32.totalorder %s135, %s149
    %p151 = scmp.eq.s32.totalorder %s20, 0
    %p152 = por %p150, %p151
    %s153 = ssub.s32 %s14, %s21
    %p154 = scmp.eq.s32.totalorder %s153, 0
    %s156 = sadd.s32 %s155, 1
    %s157 = scalar_select %p154, %s155, %s156
    %p160 = pneg %p154
    %p161 = scmp.eq.s32.totalorder %s14, 1
    %p162 = por %p160, %p161
    %p163 = scmp.ne.s32.totalorder %s155, %s158
    %p164 = scmp.eq.s32.totalorder %s14, 0
    %p165 = por %p163, %p164
    %p166 = scmp.ne.s32.totalorder %s155, %s158
    %p167 = scmp.eq.s32.totalorder %s19, 1
    %p168 = por %p166, %p167
    %p169 = scmp.ne.s32.totalorder %s158, %s159
    %p170 = scmp.eq.s32.totalorder %s19, 0
    %p171 = por %p169, %p170
    %p172 = scmp.ne.s32.totalorder %s158, %s159
    %p173 = scmp.eq.s32.totalorder %s20, 1
    %p174 = por %p172, %p173
    %p176 = scmp.ne.s32.totalorder %s159, %s175
    %p177 = scmp.eq.s32.totalorder %s20, 0
    %p178 = por %p176, %p177
    %s179 = ssub.s32 %s14, %s21
    %p180 = scmp.eq.s32.totalorder %s179, 0
    %s182 = sadd.s32 %s181, 1
    %s183 = scalar_select %p180, %s181, %s182
    %p186 = pneg %p180
    %p187 = scmp.eq.s32.totalorder %s14, 1
    %p188 = por %p186, %p187
    %p189 = scmp.ne.s32.totalorder %s181, %s184
    %p190 = scmp.eq.s32.totalorder %s14, 0
    %p191 = por %p189, %p190
    %p192 = scmp.ne.s32.totalorder %s181, %s184
    %p193 = scmp.eq.s32.totalorder %s19, 1
    %p194 = por %p192, %p193
    %p195 = scmp.ne.s32.totalorder %s184, %s185
    %p196 = scmp.eq.s32.totalorder %s19, 0
    %p197 = por %p195, %p196
    %p198 = scmp.ne.s32.totalorder %s184, %s185
    %p199 = scmp.eq.s32.totalorder %s20, 1
    %p200 = por %p198, %p199
    %p202 = scmp.ne.s32.totalorder %s185, %s201
    %p203 = scmp.eq.s32.totalorder %s20, 0
    %p204 = por %p202, %p203
    %p205 = scmp.le.s32.totalorder 1, %s14
    %p206 = scmp.lt.s32.totalorder %s14, 3
    %p207 = pnand %p205, %p206
    %p208 = pneg %p207
    // Predicated region
    $region9: #{scalable_dag_forward.1} parent=5 // pred_check
      _
    $region10: #{scalable_dag_forward.1} parent=5 // pred_check_branch
      %210 = sbr.rel (%p207) target = $region12
    $region11: #{scalable_dag_forward.1} parent=5 // pred_region
      %s211 = ssub.s32 %s14, 1
      // Predicated region
      $region13: #{scalable_dag_forward.1} parent=11 // pred_check
        %p212 = pneg %p61
      $region14: #{scalable_dag_forward.1} parent=11 // pred_check_branch
        %214 = sbr.rel (%p212) target = $region16
      $region15: #{scalable_dag_forward.1} parent=11 // pred_region
        _
      $region16: #{scalable_dag_forward.1} parent=11 // pred_fallthru
        _
      // Predicated region
      $region17: #{scalable_dag_forward.1} parent=11 // pred_check
        %p215 = pneg %p82
      $region18: #{scalable_dag_forward.1} parent=11 // pred_check_branch
        %217 = sbr.rel (%p215) target = $region20
      $region19: #{scalable_dag_forward.1} parent=11 // pred_region
        _
      $region20: #{scalable_dag_forward.1} parent=11 // pred_fallthru
        _
      // Predicated region
      $region21: #{scalable_dag_forward.1} parent=11 // pred_check
        %p218 = pneg %p103
      $region22: #{scalable_dag_forward.1} parent=11 // pred_check_branch
        %220 = sbr.rel (%p218) target = $region24
      $region23: #{scalable_dag_forward.1} parent=11 // pred_region
        _
      $region24: #{scalable_dag_forward.1} parent=11 // pred_fallthru
        _
      // Predicated region
      $region25: #{scalable_dag_forward.1} parent=11 // pred_check
        %p221 = pneg %p124
      $region26: #{scalable_dag_forward.1} parent=11 // pred_check_branch
        %223 = sbr.rel (%p221) target = $region28
      $region27: #{scalable_dag_forward.1} parent=11 // pred_region
        _
      $region28: #{scalable_dag_forward.1} parent=11 // pred_fallthru
        _
      // Predicated region
      $region29: #{scalable_dag_forward.1} parent=11 // pred_check
        %p224 = pneg %p145
      $region30: #{scalable_dag_forward.1} parent=11 // pred_check_branch
        %226 = sbr.rel (%p224) target = $region32
      $region31: #{scalable_dag_forward.1} parent=11 // pred_region
        _
      $region32: #{scalable_dag_forward.1} parent=11 // pred_fallthru
        _
    $region12: #{scalable_dag_forward.1} parent=5 // pred_fallthru
      _
    %p227 = scmp.lt.s32.totalorder %s14, 2
    // Predicated region
    $region33: #{scalable_dag_forward.1} parent=5 // pred_check
      %p228 = pneg %p227
    $region34: #{scalable_dag_forward.1} parent=5 // pred_check_branch
      %230 = sbr.rel (%p228) target = $region36
    $region35: #{scalable_dag_forward.1} parent=5 // pred_region
      // Predicated region
      $region37: #{scalable_dag_forward.1} parent=35 // pred_check
        %p231 = pneg %p34
      $region38: #{scalable_dag_forward.1} parent=35 // pred_check_branch
        %233 = sbr.rel (%p231) target = $region40
      $region39: #{scalable_dag_forward.1} parent=35 // pred_region
        %s234 = smul.u32 32, %s14
        %p235 = scmp.lt.s32.totalorder %s234, 63
        %s236 = scalar_select %p235, %s234, 63
        %s237 = smul.addr %s236, 8
        %s238 = scalar_lea.vmem %s0, %s237
        %s239 = smul.u32 32, %s14
      $region40: #{scalable_dag_forward.1} parent=35 // pred_fallthru
        _
    $region36: #{scalable_dag_forward.1} parent=5 // pred_fallthru
      _
    %p240 = scmp.le.s32.totalorder 1, %s14
    %p241 = scmp.lt.s32.totalorder %s14, 3
    %p242 = pnand %p240, %p241
    %p243 = pneg %p242
    // Predicated region
    $region41: #{scalable_dag_forward.1} parent=5 // pred_check
      _
    $region42: #{scalable_dag_forward.1} parent=5 // pred_check_branch
      %245 = sbr.rel (%p242) target = $region44
    $region43: #{scalable_dag_forward.1} parent=5 // pred_region
      %s246 = ssub.s32 %s14, 1
      %s247 = smul.u32 32, %s19
      %p248 = scmp.lt.s32.totalorder %s247, 63
      %s249 = scalar_select %p248, %s247, 63
      %s250 = smul.addr %s249, 8
      %s251 = scalar_lea.vmem %s0, %s250
      %p252 = pneg %p40
      %p253 = pneg %p37
      %p254 = pneg %p61
      %p255 = pneg %p58
      %p256 = pneg %p82
      %p257 = pneg %p79
      %p258 = pneg %p103
      %p259 = pneg %p100
      %p260 = pneg %p124
      %p261 = pneg %p121
      %p262 = pneg %p145
      %p263 = pneg %p142
      %p264 = pneg %p171
      %p265 = pneg %p168
      %s266 = smul.u32 32, %s19
      %p267 = scmp.lt.s32.totalorder %s266, 63
      %s268 = scalar_select %p267, %s266, 63
      %s269 = smul.addr %s268, 8
      %s270 = scalar_lea.vmem %s6, %s269
      %p271 = pneg %p197
      %p272 = pneg %p194
      %p273 = scmp.lt.s32.totalorder %s19, 1
      %s274 = scalar_select %p273, %s19, 1
      %s275 = smul.addr %s274, 8
      %s276 = scalar_lea.vmem %s7, %s275
      %s277 = smul.u32 32, %s19
      %p278 = scmp.lt.s32.totalorder %s277, 63
      %s279 = scalar_select %p278, %s277, 63
      %s280 = smul.addr %s279, 8
      %s281 = scalar_lea.vmem %s0, %s280
      %s282 = smul.u32 32, %s19
      %s283 = smul.u32 32, %s19
      %p284 = scmp.lt.s32.totalorder %s283, 63
      %s285 = scalar_select %p284, %s283, 63
      %s286 = smul.addr %s285, 8
      %s287 = scalar_lea.vmem %s6, %s286
      %s288 = smul.u32 32, %s19
      %p289 = scmp.lt.s32.totalorder %s19, 1
      %s290 = scalar_select %p289, %s19, 1
      %s291 = smul.addr %s290, 8
      %s292 = scalar_lea.vmem %s7, %s291
      %v293 = vld [vmem:[%s281] sm:$0xff]
      %v294 = vld [vmem:[%s281 + $0x8] sm:$0xff]
      %v295 = vld [vmem:[%s281 + $0x10] sm:$0xff]
      %v296 = vld [vmem:[%s281 + $0x18] sm:$0xff]
      %v297 = vld [vmem:[%s281 + $0x20] sm:$0xff]
      %v298 = vld [vmem:[%s281 + $0x28] sm:$0xff]
      %v299 = vld [vmem:[%s281 + $0x30] sm:$0xff]
      %v300 = vld [vmem:[%s281 + $0x38] sm:$0xff]
      %v301 = vld [vmem:[%s281 + $0x40] sm:$0xff]
      %v302 = vld [vmem:[%s281 + $0x48] sm:$0xff]
      %v303 = vld [vmem:[%s281 + $0x50] sm:$0xff]
      %v304 = vld [vmem:[%s281 + $0x58] sm:$0xff]
      %v305 = vld [vmem:[%s281 + $0x60] sm:$0xff]
      %v306 = vld [vmem:[%s281 + $0x68] sm:$0xff]
      %v307 = vld [vmem:[%s281 + $0x70] sm:$0xff]
      %v308 = vld [vmem:[%s281 + $0x78] sm:$0xff]
      %v309 = vld [vmem:[%s281 + $0x80] sm:$0xff]
      %v310 = vld [vmem:[%s281 + $0x88] sm:$0xff]
      %v311 = vld [vmem:[%s281 + $0x90] sm:$0xff]
      %v312 = vld [vmem:[%s281 + $0x98] sm:$0xff]
      %v313 = vld [vmem:[%s281 + $0xa0] sm:$0xff]
      %v314 = vld [vmem:[%s281 + $0xa8] sm:$0xff]
      %v315 = vld [vmem:[%s281 + $0xb0] sm:$0xff]
      %v316 = vld [vmem:[%s281 + $0xb8] sm:$0xff]
      %v317 = vld [vmem:[%s281 + $0xc0] sm:$0xff]
      %v318 = vld [vmem:[%s281 + $0xc8] sm:$0xff]
      %v319 = vld [vmem:[%s281 + $0xd0] sm:$0xff]
      %v320 = vld [vmem:[%s281 + $0xd8] sm:$0xff]
      %v321 = vld [vmem:[%s281 + $0xe0] sm:$0xff]
      %v322 = vld [vmem:[%s281 + $0xe8] sm:$0xff]
      %v323 = vld [vmem:[%s281 + $0xf0] sm:$0xff]
      %v324 = vld [vmem:[%s281 + $0xf8] sm:$0xff]
      %v325 = vld [vmem:[%s1] sm:$0xff]
      %v326 = vld [vmem:[%s1 + $0x8] sm:$0xff]
      %v327 = vld [vmem:[%s1 + $0x10] sm:$0xff]
      %v328 = vld [vmem:[%s1 + $0x18] sm:$0xff]
      %v329 = vld [vmem:[%s1 + $0x20] sm:$0xff]
      %v330 = vld [vmem:[%s1 + $0x28] sm:$0xff]
      %v331 = vld [vmem:[%s1 + $0x30] sm:$0xff]
      %v332 = vld [vmem:[%s1 + $0x38] sm:$0xff]
      %v333 = vld [vmem:[%s2] sm:$0xff]
      %v334 = vld [vmem:[%s2 + $0x8] sm:$0xff]
      %v335 = vld [vmem:[%s2 + $0x10] sm:$0xff]
      %v336 = vld [vmem:[%s2 + $0x18] sm:$0xff]
      %v337 = vld [vmem:[%s2 + $0x20] sm:$0xff]
      %v338 = vld [vmem:[%s2 + $0x28] sm:$0xff]
      %v339 = vld [vmem:[%s2 + $0x30] sm:$0xff]
      %v340 = vld [vmem:[%s2 + $0x38] sm:$0xff]
      %342 = vset.pattern.permute.xlu0 0
      %343 = vperm.xlu0 %342, %v333
      %v344 = vpop.permute.xlu0 %343
      %347 = vset.pattern.permute.xlu0 0
      %348 = vperm.xlu0 %347, %v334
      %v349 = vpop.permute.xlu0 %348
      %352 = vset.pattern.permute.xlu0 0
      %353 = vperm.xlu0 %352, %v335
      %v354 = vpop.permute.xlu0 %353
      %357 = vset.pattern.permute.xlu0 0
      %358 = vperm.xlu0 %357, %v336
      %v359 = vpop.permute.xlu0 %358
      %362 = vset.pattern.permute.xlu0 0
      %363 = vperm.xlu0 %362, %v337
      %v364 = vpop.permute.xlu0 %363
      %367 = vset.pattern.permute.xlu0 0
      %368 = vperm.xlu0 %367, %v338
      %v369 = vpop.permute.xlu0 %368
      %372 = vset.pattern.permute.xlu0 0
      %373 = vperm.xlu0 %372, %v339
      %v374 = vpop.permute.xlu0 %373
      %377 = vset.pattern.permute.xlu0 0
      %378 = vperm.xlu0 %377, %v340
      %v379 = vpop.permute.xlu0 %378
      %vm381 = vcmask 64512
      %v383 = vsel %vm381, %v325, 0
      %v386 = vsel %vm381, %v326, 0
      %v389 = vsel %vm381, %v327, 0
      %v392 = vsel %vm381, %v328, 0
      %v395 = vsel %vm381, %v329, 0
      %v398 = vsel %vm381, %v330, 0
      %v401 = vsel %vm381, %v331, 0
      %v404 = vsel %vm381, %v332, 0
      %v407 = vsel %vm381, %v293, 0
      %v410 = vsel %vm381, %v294, 0
      %v413 = vsel %vm381, %v295, 0
      %v416 = vsel %vm381, %v296, 0
      %v419 = vsel %vm381, %v297, 0
      %v422 = vsel %vm381, %v298, 0
      %v425 = vsel %vm381, %v299, 0
      %v428 = vsel %vm381, %v300, 0
      %v431 = vsel %vm381, %v301, 0
      %v434 = vsel %vm381, %v302, 0
      %v437 = vsel %vm381, %v303, 0
      %v440 = vsel %vm381, %v304, 0
      %v443 = vsel %vm381, %v305, 0
      %v446 = vsel %vm381, %v306, 0
      %v449 = vsel %vm381, %v307, 0
      %v452 = vsel %vm381, %v308, 0
      %v455 = vsel %vm381, %v309, 0
      %v458 = vsel %vm381, %v310, 0
      %v461 = vsel %vm381, %v311, 0
      %v464 = vsel %vm381, %v312, 0
      %v467 = vsel %vm381, %v313, 0
      %v470 = vsel %vm381, %v314, 0
      %v473 = vsel %vm381, %v315, 0
      %v476 = vsel %vm381, %v316, 0
      %v479 = vsel %vm381, %v317, 0
      %v482 = vsel %vm381, %v318, 0
      %v485 = vsel %vm381, %v319, 0
      %v488 = vsel %vm381, %v320, 0
      %v491 = vsel %vm381, %v321, 0
      %v494 = vsel %vm381, %v322, 0
      %v497 = vsel %vm381, %v323, 0
      %v500 = vsel %vm381, %v324, 0
      %502 = vmatprep.subr.mxu0 0.0
      %503 = vmatpush1.xpose.msra.mxu0 %v407
      %504 = vmatprep.subr.mxu0 0.0
      %505 = vmatpush1.xpose.msra.mxu0 %v410
      %506 = vmatprep.subr.mxu0 0.0
      %507 = vmatpush1.xpose.msra.mxu0 %v413
      %508 = vmatprep.subr.mxu0 0.0
      %509 = vmatpush1.xpose.msra.mxu0 %v416
      %510 = vmatprep.subr.mxu0 0.0
      %511 = vmatpush1.xpose.msra.mxu0 %v419
      %512 = vmatprep.subr.mxu0 0.0
      %513 = vmatpush1.xpose.msra.mxu0 %v422
      %514 = vmatprep.subr.mxu0 0.0
      %515 = vmatpush1.xpose.msra.mxu0 %v425
      %516 = vmatprep.subr.mxu0 0.0
      %517 = vmatpush1.xpose.msra.mxu0 %v428
      %518 = vmatprep.subr.mxu0 0.0
      %519 = vmatpush1.xpose.msra.mxu0 %v431
      %520 = vmatprep.subr.mxu0 0.0
      %521 = vmatpush1.xpose.msra.mxu0 %v434
      %522 = vmatprep.subr.mxu0 0.0
      %523 = vmatpush1.xpose.msra.mxu0 %v437
      %524 = vmatprep.subr.mxu0 0.0
      %525 = vmatpush1.xpose.msra.mxu0 %v440
      %526 = vmatprep.subr.mxu0 0.0
      %527 = vmatpush1.xpose.msra.mxu0 %v443
      %528 = vmatprep.subr.mxu0 0.0
      %529 = vmatpush1.xpose.msra.mxu0 %v446
      %530 = vmatprep.subr.mxu0 0.0
      %531 = vmatpush1.xpose.msra.mxu0 %v449
      %532 = vmatprep.subr.mxu0 0.0
      %533 = vmatpush1.xpose.msra.mxu0 %v452
      %534 = vmatprep.subr.mxu0 0.0
      %535 = vmatpush1.xpose.msra.mxu0 %v455
      %536 = vmatprep.subr.mxu0 0.0
      %537 = vmatpush1.xpose.msra.mxu0 %v458
      %538 = vmatprep.subr.mxu0 0.0
      %539 = vmatpush1.xpose.msra.mxu0 %v461
      %540 = vmatprep.subr.mxu0 0.0
      %541 = vmatpush1.xpose.msra.mxu0 %v464
      %542 = vmatprep.subr.mxu0 0.0
      %543 = vmatpush1.xpose.msra.mxu0 %v467
      %544 = vmatprep.subr.mxu0 0.0
      %545 = vmatpush1.xpose.msra.mxu0 %v470
      %546 = vmatprep.subr.mxu0 0.0
      %547 = vmatpush1.xpose.msra.mxu0 %v473
      %548 = vmatprep.subr.mxu0 0.0
      %549 = vmatpush1.xpose.msra.mxu0 %v476
      %550 = vmatprep.subr.mxu0 0.0
      %551 = vmatpush1.xpose.msra.mxu0 %v479
      %552 = vmatprep.subr.mxu0 0.0
      %553 = vmatpush1.xpose.msra.mxu0 %v482
      %554 = vmatprep.subr.mxu0 0.0
      %555 = vmatpush1.xpose.msra.mxu0 %v485
      %556 = vmatprep.subr.mxu0 0.0
      %557 = vmatpush1.xpose.msra.mxu0 %v488
      %558 = vmatprep.subr.mxu0 0.0
      %559 = vmatpush1.xpose.msra.mxu0 %v491
      %560 = vmatprep.subr.mxu0 0.0
      %561 = vmatpush1.xpose.msra.mxu0 %v494
      %562 = vmatprep.subr.mxu0 0.0
      %563 = vmatpush1.xpose.msra.mxu0 %v497
      %564 = vmatprep.subr.mxu0 0.0
      %565 = vmatpush1.xpose.msra.mxu0 %v500
      %566 = vmatprep.mubr.f32.mxu0 0.0
      %567 = vmatmul.mubr.f32.gmra.mrb[0].mxu0 %v383
      %v568 = vpop.f32.mrb[0].mxu0
      %v569 = vadd.f32 %v344, %v568
      %v570 = vpop.f32.mrb[0].mxu0
      %v571 = vadd.f32 %v344, %v570
      %572 = vmatprep.mubr.f32.mxu0 0.0
      %573 = vmatmul.mubr.f32.gmra.mrb[0].mxu0 %v386
      %v574 = vpop.f32.mrb[0].mxu0
      %v575 = vadd.f32 %v349, %v574
      %v576 = vpop.f32.mrb[0].mxu0
      %v577 = vadd.f32 %v349, %v576
      %578 = vmatprep.mubr.f32.mxu0 0.0
      %579 = vmatmul.mubr.f32.gmra.mrb[0].mxu0 %v389
      %v580 = vpop.f32.mrb[0].mxu0
      %v581 = vadd.f32 %v354, %v580
      %v582 = vpop.f32.mrb[0].mxu0
      %v583 = vadd.f32 %v354, %v582
      %584 = vmatprep.mubr.f32.mxu0 0.0
      %585 = vmatmul.mubr.f32.gmra.mrb[0].mxu0 %v392
      %v586 = vpop.f32.mrb[0].mxu0
      %v587 = vadd.f32 %v359, %v586
      %v588 = vpop.f32.mrb[0].mxu0
      %v589 = vadd.f32 %v359, %v588
      %590 = vmatprep.mubr.f32.mxu0 0.0
      %591 = vmatmul.mubr.f32.gmra.mrb[0].mxu0 %v395
      %v592 = vpop.f32.mrb[0].mxu0
      %v593 = vadd.f32 %v364, %v592
      %v594 = vpop.f32.mrb[0].mxu0
      %v595 = vadd.f32 %v364, %v594
      %596 = vmatprep.mubr.f32.mxu0 0.0
      %597 = vmatmul.mubr.f32.gmra.mrb[0].mxu0 %v398
      %v598 = vpop.f32.mrb[0].mxu0
      %v599 = vadd.f32 %v369, %v598
      %v600 = vpop.f32.mrb[0].mxu0
      %v601 = vadd.f32 %v369, %v600
      %602 = vmatprep.mubr.f32.mxu0 0.0
      %603 = vmatmul.mubr.f32.gmra.mrb[0].mxu0 %v401
      %v604 = vpop.f32.mrb[0].mxu0
      %v605 = vadd.f32 %v374, %v604
      %v606 = vpop.f32.mrb[0].mxu0
      %v607 = vadd.f32 %v374, %v606
      %608 = vmatprep.mubr.f32.mxu0 0.0
      %609 = vmatmul.mubr.f32.gmra.mrb[0].mxu0 %v404
      %v610 = vpop.f32.mrb[0].mxu0
      %v611 = vadd.f32 %v379, %v610
      %v612 = vpop.f32.mrb[0].mxu0
      %v613 = vadd.f32 %v379, %v612
      %614 = vdwg.mxu0
      %v615 = vxor.u32 %v569, 2147483648
      %v616 = vxor.u32 %v571, 2147483648
      %v617 = vxor.u32 %v575, 2147483648
      %v618 = vxor.u32 %v577, 2147483648
      %v619 = vxor.u32 %v581, 2147483648
      %v620 = vxor.u32 %v583, 2147483648
      %v621 = vxor.u32 %v587, 2147483648
      %v622 = vxor.u32 %v589, 2147483648
      %v623 = vxor.u32 %v593, 2147483648
      %v624 = vxor.u32 %v595, 2147483648
      %v625 = vxor.u32 %v599, 2147483648
      %v626 = vxor.u32 %v601, 2147483648
      %v627 = vxor.u32 %v605, 2147483648
      %v628 = vxor.u32 %v607, 2147483648
      %v629 = vxor.u32 %v611, 2147483648
      %v630 = vxor.u32 %v613, 2147483648
      %v631 = vmul.f32 %v615, 1.442695
      %v632 = vpow.pop %v631
      %v633 = vmul.f32 %v616, 1.442695
      %v634 = vpow.pop %v633
      %v635 = vmul.f32 %v617, 1.442695
      %v636 = vpow.pop %v635
      %v637 = vmul.f32 %v618, 1.442695
      %v638 = vpow.pop %v637
      %v639 = vmul.f32 %v619, 1.442695
      %v640 = vpow.pop %v639
      %v641 = vmul.f32 %v620, 1.442695
      %v642 = vpow.pop %v641
      %v643 = vmul.f32 %v621, 1.442695
      %v644 = vpow.pop %v643
      %v645 = vmul.f32 %v622, 1.442695
      %v646 = vpow.pop %v645
      %v647 = vmul.f32 %v623, 1.442695
      %v648 = vpow.pop %v647
      %v649 = vmul.f32 %v624, 1.442695
      %v650 = vpow.pop %v649
      %v651 = vmul.f32 %v625, 1.442695
      %v652 = vpow.pop %v651
      %v653 = vmul.f32 %v626, 1.442695
      %v654 = vpow.pop %v653
      %v655 = vmul.f32 %v627, 1.442695
      %v656 = vpow.pop %v655
      %v657 = vmul.f32 %v628, 1.442695
      %v658 = vpow.pop %v657
      %v659 = vmul.f32 %v629, 1.442695
      %v660 = vpow.pop %v659
      %v661 = vmul.f32 %v630, 1.442695
      %v662 = vpow.pop %v661
      %v663 = vadd.f32 %v632, 1.0
      %v664 = vadd.f32 %v634, 1.0
      %v665 = vadd.f32 %v636, 1.0
      %v666 = vadd.f32 %v638, 1.0
      %v667 = vadd.f32 %v640, 1.0
      %v668 = vadd.f32 %v642, 1.0
      %v669 = vadd.f32 %v644, 1.0
      %v670 = vadd.f32 %v646, 1.0
      %v671 = vadd.f32 %v648, 1.0
      %v672 = vadd.f32 %v650, 1.0
      %v673 = vadd.f32 %v652, 1.0
      %v674 = vadd.f32 %v654, 1.0
      %v675 = vadd.f32 %v656, 1.0
      %v676 = vadd.f32 %v658, 1.0
      %v677 = vadd.f32 %v660, 1.0
      %v678 = vadd.f32 %v662, 1.0
      %v679 = vrcp.pop %v663
      %v680 = vmul.f32 1.0, %v679
      %v681 = vrcp.pop %v664
      %v682 = vmul.f32 1.0, %v681
      %v683 = vrcp.pop %v665
      %v684 = vmul.f32 1.0, %v683
      %v685 = vrcp.pop %v666
      %v686 = vmul.f32 1.0, %v685
      %v687 = vrcp.pop %v667
      %v688 = vmul.f32 1.0, %v687
      %v689 = vrcp.pop %v668
      %v690 = vmul.f32 1.0, %v689
      %v691 = vrcp.pop %v669
      %v692 = vmul.f32 1.0, %v691
      %v693 = vrcp.pop %v670
      %v694 = vmul.f32 1.0, %v693
      %v695 = vrcp.pop %v671
      %v696 = vmul.f32 1.0, %v695
      %v697 = vrcp.pop %v672
      %v698 = vmul.f32 1.0, %v697
      %v699 = vrcp.pop %v673
      %v700 = vmul.f32 1.0, %v699
      %v701 = vrcp.pop %v674
      %v702 = vmul.f32 1.0, %v701
      %v703 = vrcp.pop %v675
      %v704 = vmul.f32 1.0, %v703
      %v705 = vrcp.pop %v676
      %v706 = vmul.f32 1.0, %v705
      %v707 = vrcp.pop %v677
      %v708 = vmul.f32 1.0, %v707
      %v709 = vrcp.pop %v678
      %v710 = vmul.f32 1.0, %v709
      %v711 = vld [vmem:[%s3] sm:$0xff]
      %v712 = vld [vmem:[%s3 + $0x8] sm:$0xff]
      %v713 = vld [vmem:[%s3 + $0x10] sm:$0xff]
      %v714 = vld [vmem:[%s3 + $0x18] sm:$0xff]
      %v715 = vld [vmem:[%s4] sm:$0xff]
      %v716 = vld [vmem:[%s4 + $0x8] sm:$0xff]
      %v717 = vld [vmem:[%s4 + $0x10] sm:$0xff]
      %v718 = vld [vmem:[%s4 + $0x18] sm:$0xff]
      %720 = vset.pattern.permute.xlu0 0
      %721 = vperm.xlu0 %720, %v715
      %v722 = vpop.permute.xlu0 %721
      %725 = vset.pattern.permute.xlu0 0
      %726 = vperm.xlu0 %725, %v716
      %v727 = vpop.permute.xlu0 %726
      %730 = vset.pattern.permute.xlu0 0
      %731 = vperm.xlu0 %730, %v717
      %v732 = vpop.permute.xlu0 %731
      %735 = vset.pattern.permute.xlu0 0
      %736 = vperm.xlu0 %735, %v718
      %v737 = vpop.permute.xlu0 %736
      %vm739 = vcmask 523264
      %v741 = vsel %vm739, %v711, 0
      %v744 = vsel %vm739, %v712, 0
      %v747 = vsel %vm739, %v713, 0
      %v750 = vsel %vm739, %v714, 0
      %752 = vmatprep.subr.mxu0 %v682
      %753 = vmatpush1.msra.mxu0 %v680
      %754 = vmatprep.subr.mxu0 %v686
      %755 = vmatpush1.msra.mxu0 %v684
      %756 = vmatprep.subr.mxu0 %v690
      %757 = vmatpush1.msra.mxu0 %v688
      %758 = vmatprep.subr.mxu0 %v694
      %759 = vmatpush1.msra.mxu0 %v692
      %760 = vmatprep.subr.mxu0 %v698
      %761 = vmatpush1.msra.mxu0 %v696
      %762 = vmatprep.subr.mxu0 %v702
      %763 = vmatpush1.msra.mxu0 %v700
      %764 = vmatprep.subr.mxu0 %v706
      %765 = vmatpush1.msra.mxu0 %v704
      %766 = vmatprep.subr.mxu0 %v710
      %767 = vmatpush1.msra.mxu0 %v708
      %768 = vmatprep.subr.mxu0 0.0
      %769 = vmatpush1.msra.mxu0 0.0
      %770 = vmatprep.subr.mxu0 0.0
      %771 = vmatpush1.msra.mxu0 0.0
      %772 = vmatprep.subr.mxu0 0.0
      %773 = vmatpush1.msra.mxu0 0.0
      %774 = vmatprep.subr.mxu0 0.0
      %775 = vmatpush1.msra.mxu0 0.0
      %776 = vmatprep.subr.mxu0 0.0
      %777 = vmatpush1.msra.mxu0 0.0
      %778 = vmatprep.subr.mxu0 0.0
      %779 = vmatpush1.msra.mxu0 0.0
      %780 = vmatprep.subr.mxu0 0.0
      %781 = vmatpush1.msra.mxu0 0.0
      %782 = vmatprep.subr.mxu0 0.0
      %783 = vmatpush1.msra.mxu0 0.0
      %784 = vmatprep.subr.mxu0 0.0
      %785 = vmatpush1.msra.mxu0 0.0
      %786 = vmatprep.subr.mxu0 0.0
      %787 = vmatpush1.msra.mxu0 0.0
      %788 = vmatprep.subr.mxu0 0.0
      %789 = vmatpush1.msra.mxu0 0.0
      %790 = vmatprep.subr.mxu0 0.0
      %791 = vmatpush1.msra.mxu0 0.0
      %792 = vmatprep.subr.mxu0 0.0
      %793 = vmatpush1.msra.mxu0 0.0
      %794 = vmatprep.subr.mxu0 0.0
      %795 = vmatpush1.msra.mxu0 0.0
      %796 = vmatprep.subr.mxu0 0.0
      %797 = vmatpush1.msra.mxu0 0.0
      %798 = vmatprep.subr.mxu0 0.0
      %799 = vmatpush1.msra.mxu0 0.0
      %800 = vmatprep.subr.mxu0 0.0
      %801 = vmatpush1.msra.mxu0 0.0
      %802 = vmatprep.subr.mxu0 0.0
      %803 = vmatpush1.msra.mxu0 0.0
      %804 = vmatprep.subr.mxu0 0.0
      %805 = vmatpush1.msra.mxu0 0.0
      %806 = vmatprep.subr.mxu0 0.0
      %807 = vmatpush1.msra.mxu0 0.0
      %808 = vmatprep.subr.mxu0 0.0
      %809 = vmatpush1.msra.mxu0 0.0
      %810 = vmatprep.subr.mxu0 0.0
      %811 = vmatpush1.msra.mxu0 0.0
      %812 = vmatprep.subr.mxu0 0.0
      %813 = vmatpush1.msra.mxu0 0.0
      %814 = vmatprep.subr.mxu0 0.0
      %815 = vmatpush1.msra.mxu0 0.0
      %816 = vmatprep.mubr.f32.mxu0 0.0
      %817 = vmatmul.mubr.f32.gmra.mrb[0].mxu0 %v741
      %v818 = vpop.f32.mrb[0].mxu0
      %v819 = vadd.f32 %v722, %v818
      %v820 = vpop.f32.mrb[0].mxu0
      %v821 = vadd.f32 %v722, %v820
      %822 = vmatprep.mubr.f32.mxu0 0.0
      %823 = vmatmul.mubr.f32.gmra.mrb[0].mxu0 %v744
      %v824 = vpop.f32.mrb[0].mxu0
      %v825 = vadd.f32 %v727, %v824
      %v826 = vpop.f32.mrb[0].mxu0
      %v827 = vadd.f32 %v727, %v826
      %828 = vmatprep.mubr.f32.mxu0 0.0
      %829 = vmatmul.mubr.f32.gmra.mrb[0].mxu0 %v747
      %v830 = vpop.f32.mrb[0].mxu0
      %v831 = vadd.f32 %v732, %v830
      %v832 = vpop.f32.mrb[0].mxu0
      %v833 = vadd.f32 %v732, %v832
      %834 = vmatprep.mubr.f32.mxu0 0.0
      %835 = vmatmul.mubr.f32.gmra.mrb[0].mxu0 %v750
      %v836 = vpop.f32.mrb[0].mxu0
      %v837 = vadd.f32 %v737, %v836
      %v838 = vpop.f32.mrb[0].mxu0
      %v839 = vadd.f32 %v737, %v838
      %840 = vdwg.mxu0
      %v841 = vxor.u32 %v819, 2147483648
      %v842 = vxor.u32 %v821, 2147483648
      %v843 = vxor.u32 %v825, 2147483648
      %v844 = vxor.u32 %v827, 2147483648
      %v845 = vxor.u32 %v831, 2147483648
      %v846 = vxor.u32 %v833, 2147483648
      %v847 = vxor.u32 %v837, 2147483648
      %v848 = vxor.u32 %v839, 2147483648
      %v849 = vmul.f32 %v841, 1.442695
      %v850 = vpow.pop %v849
      %v851 = vmul.f32 %v842, 1.442695
      %v852 = vpow.pop %v851
      %v853 = vmul.f32 %v843, 1.442695
      %v854 = vpow.pop %v853
      %v855 = vmul.f32 %v844, 1.442695
      %v856 = vpow.pop %v855
      %v857 = vmul.f32 %v845, 1.442695
      %v858 = vpow.pop %v857
      %v859 = vmul.f32 %v846, 1.442695
      %v860 = vpow.pop %v859
      %v861 = vmul.f32 %v847, 1.442695
      %v862 = vpow.pop %v861
      %v863 = vmul.f32 %v848, 1.442695
      %v864 = vpow.pop %v863
      %v865 = vadd.f32 %v850, 1.0
      %v866 = vadd.f32 %v852, 1.0
      %v867 = vadd.f32 %v854, 1.0
      %v868 = vadd.f32 %v856, 1.0
      %v869 = vadd.f32 %v858, 1.0
      %v870 = vadd.f32 %v860, 1.0
      %v871 = vadd.f32 %v862, 1.0
      %v872 = vadd.f32 %v864, 1.0
      %v873 = vrcp.pop %v865
      %v874 = vmul.f32 1.0, %v873
      %v875 = vrcp.pop %v866
      %v876 = vmul.f32 1.0, %v875
      %v877 = vrcp.pop %v867
      %v878 = vmul.f32 1.0, %v877
      %v879 = vrcp.pop %v868
      %v880 = vmul.f32 1.0, %v879
      %v881 = vrcp.pop %v869
      %v882 = vmul.f32 1.0, %v881
      %v883 = vrcp.pop %v870
      %v884 = vmul.f32 1.0, %v883
      %v885 = vrcp.pop %v871
      %v886 = vmul.f32 1.0, %v885
      %v887 = vrcp.pop %v872
      %v888 = vmul.f32 1.0, %v887
      %v889 = vld [vmem:[%s5] sm:$0xff]
      %vm890 = vcmask 261120
      %v892 = vsel %vm890, %v889, 0
      %894 = vmatprep.subr.mxu0 %v876
      %895 = vmatpush1.msra.mxu0 %v874
      %896 = vmatprep.subr.mxu0 %v880
      %897 = vmatpush1.msra.mxu0 %v878
      %898 = vmatprep.subr.mxu0 %v884
      %899 = vmatpush1.msra.mxu0 %v882
      %900 = vmatprep.subr.mxu0 %v888
      %901 = vmatpush1.msra.mxu0 %v886
      %902 = vmatprep.subr.mxu0 0.0
      %903 = vmatpush1.msra.mxu0 0.0
      %904 = vmatprep.subr.mxu0 0.0
      %905 = vmatpush1.msra.mxu0 0.0
      %906 = vmatprep.subr.mxu0 0.0
      %907 = vmatpush1.msra.mxu0 0.0
      %908 = vmatprep.subr.mxu0 0.0
      %909 = vmatpush1.msra.mxu0 0.0
      %910 = vmatprep.subr.mxu0 0.0
      %911 = vmatpush1.msra.mxu0 0.0
      %912 = vmatprep.subr.mxu0 0.0
      %913 = vmatpush1.msra.mxu0 0.0
      %914 = vmatprep.subr.mxu0 0.0
      %915 = vmatpush1.msra.mxu0 0.0
      %916 = vmatprep.subr.mxu0 0.0
      %917 = vmatpush1.msra.mxu0 0.0
      %918 = vmatprep.subr.mxu0 0.0
      %919 = vmatpush1.msra.mxu0 0.0
      %920 = vmatprep.subr.mxu0 0.0
      %921 = vmatpush1.msra.mxu0 0.0
      %922 = vmatprep.subr.mxu0 0.0
      %923 = vmatpush1.msra.mxu0 0.0
      %924 = vmatprep.subr.mxu0 0.0
      %925 = vmatpush1.msra.mxu0 0.0
      %926 = vmatprep.subr.mxu0 0.0
      %927 = vmatpush1.msra.mxu0 0.0
      %928 = vmatprep.subr.mxu0 0.0
      %929 = vmatpush1.msra.mxu0 0.0
      %930 = vmatprep.subr.mxu0 0.0
      %931 = vmatpush1.msra.mxu0 0.0
      %932 = vmatprep.subr.mxu0 0.0
      %933 = vmatpush1.msra.mxu0 0.0
      %934 = vmatprep.subr.mxu0 0.0
      %935 = vmatpush1.msra.mxu0 0.0
      %936 = vmatprep.subr.mxu0 0.0
      %937 = vmatpush1.msra.mxu0 0.0
      %938 = vmatprep.subr.mxu0 0.0
      %939 = vmatpush1.msra.mxu0 0.0
      %940 = vmatprep.subr.mxu0 0.0
      %941 = vmatpush1.msra.mxu0 0.0
      %942 = vmatprep.subr.mxu0 0.0
      %943 = vmatpush1.msra.mxu0 0.0
      %944 = vmatprep.subr.mxu0 0.0
      %945 = vmatpush1.msra.mxu0 0.0
      %946 = vmatprep.subr.mxu0 0.0
      %947 = vmatpush1.msra.mxu0 0.0
      %948 = vmatprep.subr.mxu0 0.0
      %949 = vmatpush1.msra.mxu0 0.0
      %950 = vmatprep.subr.mxu0 0.0
      %951 = vmatpush1.msra.mxu0 0.0
      %952 = vmatprep.subr.mxu0 0.0
      %953 = vmatpush1.msra.mxu0 0.0
      %954 = vmatprep.subr.mxu0 0.0
      %955 = vmatpush1.msra.mxu0 0.0
      %956 = vmatprep.subr.mxu0 0.0
      %957 = vmatpush1.msra.mxu0 0.0
      %958 = vmatprep.mubr.f32.mxu0 0.0
      %959 = vmatmul.mubr.f32.gmra.mrb[0].mxu0 %v892
      %v960 = vpop.f32.mrb[0].mxu0
      %v961 = vadd.f32 0.0, %v960
      %v962 = vpop.f32.mrb[0].mxu0
      %v963 = vadd.f32 0.0, %v962
      %964 = vdwg.mxu0
      %965 = vxpose.xlu0.b32.start [1/16] %v961, 128
      %966 = vxpose.xlu0.b32.cont [2/16] 0.0, 128
      %967 = vxpose.xlu0.b32.cont [3/16] 0.0, 128
      %968 = vxpose.xlu0.b32.cont [4/16] 0.0, 128
      %969 = vxpose.xlu0.b32.cont [5/16] 0.0, 128
      %970 = vxpose.xlu0.b32.cont [6/16] 0.0, 128
      %971 = vxpose.xlu0.b32.cont [7/16] 0.0, 128
      %972 = vxpose.xlu0.b32.cont [8/16] 0.0, 128
      %973 = vxpose.xlu0.b32.cont [9/16] 0.0, 128
      %974 = vxpose.xlu0.b32.cont [10/16] 0.0, 128
      %975 = vxpose.xlu0.b32.cont [11/16] 0.0, 128
      %976 = vxpose.xlu0.b32.cont [12/16] 0.0, 128
      %977 = vxpose.xlu0.b32.cont [13/16] 0.0, 128
      %978 = vxpose.xlu0.b32.cont [14/16] 0.0, 128
      %979 = vxpose.xlu0.b32.cont [15/16] 0.0, 128
      %980 = vxpose.xlu0.b32.end [16/16] 0.0, 128
      %v981 = vpop.trf.xlu0
      %v982 = vpop.trf.xlu0
      %v983 = vpop.trf.xlu0
      %v984 = vpop.trf.xlu0
      %v985 = vpop.trf.xlu0
      %v986 = vpop.trf.xlu0
      %v987 = vpop.trf.xlu0
      %v988 = vpop.trf.xlu0
      %v989 = vpop.trf.xlu0
      %v990 = vpop.trf.xlu0
      %v991 = vpop.trf.xlu0
      %v992 = vpop.trf.xlu0
      %v993 = vpop.trf.xlu0
      %v994 = vpop.trf.xlu0
      %v995 = vpop.trf.xlu0
      %v996 = vpop.trf.xlu0
      %997 = vxpose.xlu0.b32.start [1/16] %v963, 128
      %998 = vxpose.xlu0.b32.cont [2/16] 0.0, 128
      %999 = vxpose.xlu0.b32.cont [3/16] 0.0, 128
      %1000 = vxpose.xlu0.b32.cont [4/16] 0.0, 128
      %1001 = vxpose.xlu0.b32.cont [5/16] 0.0, 128
      %1002 = vxpose.xlu0.b32.cont [6/16] 0.0, 128
      %1003 = vxpose.xlu0.b32.cont [7/16] 0.0, 128
      %1004 = vxpose.xlu0.b32.cont [8/16] 0.0, 128
      %1005 = vxpose.xlu0.b32.cont [9/16] 0.0, 128
      %1006 = vxpose.xlu0.b32.cont [10/16] 0.0, 128
      %1007 = vxpose.xlu0.b32.cont [11/16] 0.0, 128
      %1008 = vxpose.xlu0.b32.cont [12/16] 0.0, 128
      %1009 = vxpose.xlu0.b32.cont [13/16] 0.0, 128
      %1010 = vxpose.xlu0.b32.cont [14/16] 0.0, 128
      %1011 = vxpose.xlu0.b32.cont [15/16] 0.0, 128
      %1012 = vxpose.xlu0.b32.end [16/16] 0.0, 128
      %v1013 = vpop.trf.xlu0
      %v1014 = vpop.trf.xlu0
      %v1015 = vpop.trf.xlu0
      %v1016 = vpop.trf.xlu0
      %v1017 = vpop.trf.xlu0
      %v1018 = vpop.trf.xlu0
      %v1019 = vpop.trf.xlu0
      %v1020 = vpop.trf.xlu0
      %v1021 = vpop.trf.xlu0
      %v1022 = vpop.trf.xlu0
      %v1023 = vpop.trf.xlu0
      %v1024 = vpop.trf.xlu0
      %v1025 = vpop.trf.xlu0
      %v1026 = vpop.trf.xlu0
      %v1027 = vpop.trf.xlu0
      %v1028 = vpop.trf.xlu0
      %1029 = vst.msk [vmem:[%s287] sm:$0xff] %vm381, %v981
      %1030 = vst.msk [vmem:[%s287 + $0x8] sm:$0xff] %vm381, %v982
      %1031 = vst.msk [vmem:[%s287 + $0x10] sm:$0xff] %vm381, %v983
      %1032 = vst.msk [vmem:[%s287 + $0x18] sm:$0xff] %vm381, %v984
      %1033 = vst.msk [vmem:[%s287 + $0x20] sm:$0xff] %vm381, %v985
      %1034 = vst.msk [vmem:[%s287 + $0x28] sm:$0xff] %vm381, %v986
      %1035 = vst.msk [vmem:[%s287 + $0x30] sm:$0xff] %vm381, %v987
      %1036 = vst.msk [vmem:[%s287 + $0x38] sm:$0xff] %vm381, %v988
      %1037 = vst.msk [vmem:[%s287 + $0x40] sm:$0xff] %vm381, %v989
      %1038 = vst.msk [vmem:[%s287 + $0x48] sm:$0xff] %vm381, %v990
      %1039 = vst.msk [vmem:[%s287 + $0x50] sm:$0xff] %vm381, %v991
      %1040 = vst.msk [vmem:[%s287 + $0x58] sm:$0xff] %vm381, %v992
      %1041 = vst.msk [vmem:[%s287 + $0x60] sm:$0xff] %vm381, %v993
      %1042 = vst.msk [vmem:[%s287 + $0x68] sm:$0xff] %vm381, %v994
      %1043 = vst.msk [vmem:[%s287 + $0x70] sm:$0xff] %vm381, %v995
      %1044 = vst.msk [vmem:[%s287 + $0x78] sm:$0xff] %vm381, %v996
      %1045 = vst.msk [vmem:[%s287 + $0x80] sm:$0xff] %vm381, %v1013
      %1046 = vst.msk [vmem:[%s287 + $0x88] sm:$0xff] %vm381, %v1014
      %1047 = vst.msk [vmem:[%s287 + $0x90] sm:$0xff] %vm381, %v1015
      %1048 = vst.msk [vmem:[%s287 + $0x98] sm:$0xff] %vm381, %v1016
      %1049 = vst.msk [vmem:[%s287 + $0xa0] sm:$0xff] %vm381, %v1017
      %1050 = vst.msk [vmem:[%s287 + $0xa8] sm:$0xff] %vm381, %v1018
      %1051 = vst.msk [vmem:[%s287 + $0xb0] sm:$0xff] %vm381, %v1019
      %1052 = vst.msk [vmem:[%s287 + $0xb8] sm:$0xff] %vm381, %v1020
      %1053 = vst.msk [vmem:[%s287 + $0xc0] sm:$0xff] %vm381, %v1021
      %1054 = vst.msk [vmem:[%s287 + $0xc8] sm:$0xff] %vm381, %v1022
      %1055 = vst.msk [vmem:[%s287 + $0xd0] sm:$0xff] %vm381, %v1023
      %1056 = vst.msk [vmem:[%s287 + $0xd8] sm:$0xff] %vm381, %v1024
      %1057 = vst.msk [vmem:[%s287 + $0xe0] sm:$0xff] %vm381, %v1025
      %1058 = vst.msk [vmem:[%s287 + $0xe8] sm:$0xff] %vm381, %v1026
      %1059 = vst.msk [vmem:[%s287 + $0xf0] sm:$0xff] %vm381, %v1027
      %1060 = vst.msk [vmem:[%s287 + $0xf8] sm:$0xff] %vm381, %v1028
      %v1061 = vmul.f32 %v961, %v961
      %v1062 = vmul.f32 %v963, %v963
      %v1063 = vadd.f32 %v1061, %v1062
      %1064 = vst [vmem:[%s292] sm:$0xff] %v1063
      %s1065 = smul.u32 32, %s19
      %p1066 = scmp.lt.s32.totalorder %s1065, 63
      %s1067 = scalar_select %p1066, %s1065, 63
      %s1068 = smul.addr %s1067, 8
      %s1069 = scalar_lea.vmem %s6, %s1068
      %p1070 = scmp.lt.s32.totalorder %s19, 1
      %s1071 = scalar_select %p1070, %s19, 1
      %s1072 = smul.addr %s1071, 8
      %s1073 = scalar_lea.vmem %s7, %s1072
      // Predicated region
      $region45: #{scalable_dag_forward.1} parent=43 // pred_check
        %p1074 = pneg %p168
      $region46: #{scalable_dag_forward.1} parent=43 // pred_check_branch
        %1076 = sbr.rel (%p1074) target = $region48
      $region47: #{scalable_dag_forward.1} parent=43 // pred_region
        %s1077 = smul.u32 32, %s19
      $region48: #{scalable_dag_forward.1} parent=43 // pred_fallthru
        _
      // Predicated region
      $region49: #{scalable_dag_forward.1} parent=43 // pred_check
        %p1078 = pneg %p194
      $region50: #{scalable_dag_forward.1} parent=43 // pred_check_branch
        %1080 = sbr.rel (%p1078) target = $region52
      $region51: #{scalable_dag_forward.1} parent=43 // pred_region
        _
      $region52: #{scalable_dag_forward.1} parent=43 // pred_fallthru
        _
    $region44: #{scalable_dag_forward.1} parent=5 // pred_fallthru
      _
    %p1081 = scmp.le.s32.totalorder 2, %s14
    // Predicated region
    $region53: #{scalable_dag_forward.1} parent=5 // pred_check
      %p1082 = pneg %p1081
    $region54: #{scalable_dag_forward.1} parent=5 // pred_check_branch
      %1084 = sbr.rel (%p1082) target = $region56
    $region55: #{scalable_dag_forward.1} parent=5 // pred_region
      %s1085 = ssub.s32 %s14, 2
      // Predicated region
      $region57: #{scalable_dag_forward.1} parent=55 // pred_check
        %p1086 = pneg %p174
      $region58: #{scalable_dag_forward.1} parent=55 // pred_check_branch
        %1088 = sbr.rel (%p1086) target = $region60
      $region59: #{scalable_dag_forward.1} parent=55 // pred_region
        %s1089 = smul.u32 32, %s20
        %p1090 = scmp.lt.s32.totalorder %s1089, 63
        %s1091 = scalar_select %p1090, %s1089, 63
        %s1092 = smul.addr %s1091, 8
        %s1093 = scalar_lea.vmem %s6, %s1092
      $region60: #{scalable_dag_forward.1} parent=55 // pred_fallthru
        _
      // Predicated region
      $region61: #{scalable_dag_forward.1} parent=55 // pred_check
        %p1094 = pneg %p200
      $region62: #{scalable_dag_forward.1} parent=55 // pred_check_branch
        %1096 = sbr.rel (%p1094) target = $region64
      $region63: #{scalable_dag_forward.1} parent=55 // pred_region
        %p1097 = scmp.lt.s32.totalorder %s20, 1
        %s1098 = scalar_select %p1097, %s20, 1
        %s1099 = smul.addr %s1098, 8
        %s1100 = scalar_lea.vmem %s7, %s1099
      $region64: #{scalable_dag_forward.1} parent=55 // pred_fallthru
        _
    $region56: #{scalable_dag_forward.1} parent=5 // pred_fallthru
      _
  $region6: #{scalable_dag_forward.1} parent=0 // loop_footer
    %s18 = sadd.s32 1, %s14
  $region7: #{scalable_dag_forward.1} parent=0 // loop_footer_branch
    %13 = sbr.rel target = $region3
  $region8: #{scalable_dag_forward.1} parent=0 // loop_exit
    _

</llo_original>
